<compile_context>
chip_gen: v7x
topology: tpu7x:2x2x1
jax: 0.10.0
libtpu: 0.0.40
codegen_flags: <defaults>
</compile_context>

<pallas_src>
from functools import partial

import numpy as np
import jax
import jax.numpy as jnp
from jax.experimental import pallas as pl
from jax.experimental.pallas import tpu as pltpu


# ---------------------------------------------------------------------------
# Tuning constants (safe across v5e / v6e / v7x)
# ---------------------------------------------------------------------------
_TARGET_BLOCK_BYTES = 2 * 1024 * 1024    # ~2 MiB of (input+output) per block
_LANE_TILE_CAP = 8192                    # max lanes per block (multiple of 128)
_VMEM_LIMIT_CAP = 32 * 1024 * 1024       # never request more scoped VMEM
_MIN_ROW_STEPS = 8                       # aim for >= 8 grid steps on rows


def _round_up(x: int, m: int) -> int:
    return ((x + m - 1) // m) * m


def _round_down(x: int, m: int) -> int:
    return (x // m) * m


def _cdiv(a: int, b: int) -> int:
    return -(-a // b)


def _sublane_multiple(dtype) -> int:
    # f32/int32 -> 8, bf16 -> 16, int8/uint8 -> 32
    return max(8, 32 // np.dtype(dtype).itemsize)


def _cast_kernel(x_ref, o_ref):
    # Fused copy + dtype cast of one (tb, tile_c) block.  Pure 1-read/1-write
    # HBM-bound work; the cast rides along on the VPU for free.
    o_ref[...] = x_ref[...].astype(o_ref.dtype)


def _cast_2d(x: jax.Array, out_dtype) -> jax.Array:
    """Elementwise dtype cast of a 2-D array via a ragged-grid Pallas kernel."""
    R, C = x.shape
    in_b = np.dtype(x.dtype).itemsize
    out_b = np.dtype(out_dtype).itemsize
    sub = max(_sublane_multiple(x.dtype), _sublane_multiple(out_dtype))

    # Lane (last-dim) tile: a multiple of 128 whenever C >= 128; the final
    # block along C may be ragged (masked) -- no padding of the array.
    if C >= 128:
        tile_c = min(_LANE_TILE_CAP, _round_down(C, 128))
    else:
        tile_c = C  # full (small) dim

    # Row tile: ~_TARGET_BLOCK_BYTES per block, but keep >= _MIN_ROW_STEPS grid
    # steps on the row axis so DMA-in / cast / DMA-out overlap and v7x's two
    # TensorCores both get work.  Final block along R may be ragged (masked).
    if R <= sub:
        tb = R  # full dim (allowed even when < 8)
    else:
        per_row_bytes = (in_b + out_b) * tile_c
        tb = max(sub, _round_down(_TARGET_BLOCK_BYTES // per_row_bytes, sub))
        tb = min(tb, _round_up(_cdiv(R, _MIN_ROW_STEPS), sub))
        tb = min(tb, _round_down(R, sub))

    grid = (_cdiv(R, tb), _cdiv(C, tile_c))

    # Scoped VMEM: 2x double-buffered (input + output) block + slack.
    block_bytes = tb * tile_c * (in_b + out_b)
    vmem_limit = int(min(_VMEM_LIMIT_CAP,
                         max(4 * 1024 * 1024, 2 * block_bytes + 2 * 1024 * 1024)))

    return pl.pallas_call(
        _cast_kernel,
        out_shape=jax.ShapeDtypeStruct((R, C), out_dtype),   # unpadded out
        grid=grid,
        in_specs=[pl.BlockSpec((tb, tile_c), lambda i, j: (i, j))],
        out_specs=pl.BlockSpec((tb, tile_c), lambda i, j: (i, j)),
        compiler_params=pltpu.CompilerParams(
            dimension_semantics=("parallel", "parallel"),
            vmem_limit_bytes=vmem_limit),
    )(x)


# Candidate lane-dense slab widths (multiples of 128) for the flat-stream view.
_SLAB_WIDTHS = (8192, 4096, 2048, 1024, 512, 256, 128)


def _flatten_cast(x_flat: jax.Array, out_dtype) -> jax.Array:
    """(B, F) -> (B, F) in out_dtype via a tiled Pallas cast kernel."""
    B, F = x_flat.shape
    N = B * F

    # Prefer viewing the flat element stream as a lane-dense (rows, width)
    # slab: reshapes of a contiguous array are free, it avoids sublane-padding
    # waste for tiny B, and it guarantees wide unmasked stores.
    width = None
    for w in _SLAB_WIDTHS:                       # widest width with >= 8 rows
        if N % w == 0 and N // w >= 8:
            width = w
            break
    if width is None:
        for w in _SLAB_WIDTHS:                   # else widest divisor at all
            if N % w == 0:
                width = w
                break

    if width is not None:
        rows = N // width
        out = _cast_2d(x_flat.reshape(rows, width), out_dtype)
        return out.reshape(B, F)

    # N not a multiple of 128: ragged (B, F) grid (no pad, masked last blocks).
    return _cast_2d(x_flat, out_dtype)


@partial(jax.jit, static_argnames=("features_dim", "out_dtype"))
def base_features_extractor_forward(observations: jax.Array,
                                    features_dim: int,
                                    out_dtype=None) -> jax.Array:
    """Flatten-style features extraction: (B, C, H, W) -> (B, features_dim).

    Preserves input dtype by default (matching SB3 FlattenExtractor).  When
    `out_dtype` differs from the input dtype, a fused flatten+cast Pallas
    kernel is used (prefer bf16 over f32 as the target when the consumer
    accepts it -- it halves the dominant output write traffic); otherwise the
    flatten is a free XLA reshape and no kernel is launched.
    """
    assert features_dim > 0
    B = observations.shape[0]
    x_flat = observations.reshape(B, -1)       # free metadata op (row-major)
    F = x_flat.shape[1]
    assert F == features_dim, (F, features_dim)

    in_dtype = x_flat.dtype
    out_dtype = in_dtype if out_dtype is None else np.dtype(out_dtype)
    if out_dtype == in_dtype:
        return x_flat                          # no kernel, no extra HBM traffic
    return _flatten_cast(x_flat, out_dtype)


class BaseFeaturesExtractorPallas:
    """Mirror of the PyTorch module: stores observation space + features_dim."""

    def __init__(self, observation_space_shape, features_dim: int = 0):
        assert features_dim > 0
        self._observation_space_shape = observation_space_shape
        self._features_dim = features_dim

    @property
    def features_dim(self) -> int:
        return self._features_dim

    def __call__(self, observations: jax.Array, out_dtype=None) -> jax.Array:
        return base_features_extractor_forward(observations,
                                               self._features_dim,
                                               out_dtype=out_dtype)


if __name__ == "__main__":
    key = jax.random.PRNGKey(0)

    # --- Primary shapes: NCHW observations, B=2, C=4, H=W=16.
    B, C, H, W = 2, 4, 16, 16
    features_dim = C * H * W                  # 1024
    extractor = BaseFeaturesExtractorPallas((C, H, W), features_dim)

    obs_u8 = jax.random.randint(key, (B, C, H, W), 0, 256, dtype=jnp.int32)
    obs_u8 = obs_u8.astype(jnp.uint8)

    # Kernel path: uint8 -> float32 (flat stream viewed as lane-dense slab).
    feats_f32 = jax.block_until_ready(extractor(obs_u8, out_dtype=jnp.float32))
    ref_f32 = obs_u8.reshape(B, -1).astype(jnp.float32)
    assert feats_f32.shape == (B, features_dim), feats_f32.shape
    assert feats_f32.dtype == jnp.float32, feats_f32.dtype
    assert jnp.array_equal(feats_f32, ref_f32), "mismatch vs flatten+cast f32"

    # Kernel path: uint8 -> bfloat16 (preferred cast target: halves the write).
    feats_bf16 = jax.block_until_ready(extractor(obs_u8, out_dtype=jnp.bfloat16))
    ref_bf16 = obs_u8.reshape(B, -1).astype(jnp.bfloat16)
    assert feats_bf16.dtype == jnp.bfloat16, feats_bf16.dtype
    assert jnp.array_equal(feats_bf16, ref_bf16), "mismatch vs flatten+cast bf16"

    # Ragged fallback path: F = 1250 (not a multiple of 128) -> cdiv grid,
    # masked last block, no padding / slicing anywhere.
    B2, C2, H2, W2 = 8, 5, 10, 25
    fd2 = C2 * H2 * W2                        # 1250
    ex2 = BaseFeaturesExtractorPallas((C2, H2, W2), fd2)
    obs2 = jax.random.randint(jax.random.PRNGKey(1), (B2, C2, H2, W2),
                              0, 256, dtype=jnp.int32).astype(jnp.uint8)
    feats2 = jax.block_until_ready(ex2(obs2, out_dtype=jnp.float32))
    assert feats2.shape == (B2, fd2), feats2.shape
    assert jnp.array_equal(feats2, obs2.reshape(B2, -1).astype(jnp.float32)), \
        "mismatch vs flatten+cast (ragged path)"

    # Same-dtype fast path: free reshape, no kernel launched.
    obs_f32 = jax.random.normal(key, (B, C, H, W), dtype=jnp.float32)
    feats_same = jax.block_until_ready(extractor(obs_f32))
    assert feats_same.shape == (B, features_dim)
    assert feats_same.dtype == jnp.float32
    assert jnp.array_equal(feats_same, obs_f32.reshape(B, -1)), \
        "mismatch vs reference flatten"

    print("KERNEL_OK")
</pallas_src>

<mosaic_0001>
module attributes {stable_mosaic.version = 11 : i64} {
  func.func @_cast_kernel(%arg0: i32, %arg1: i32, %arg2: memref<8x256xi8, #tpu.memory_space<vmem>>, %arg3: memref<8x256xf32, #tpu.memory_space<vmem>>) attributes {dimension_semantics = [#tpu.dimension_semantics<parallel>, #tpu.dimension_semantics<parallel>], iteration_bounds = array<i64: 1, 1>, scalar_prefetch = 0 : i64, scratch_operands = 0 : i64, tpu.core_type = #tpu.core_type<tc>, window_params = [{transform_indices = @transform_0, window_bounds = array<i64: 8, 256>}, {transform_indices = @transform_1, window_bounds = array<i64: 8, 256>}]} {
    %c0 = arith.constant 0 : index
    %c0_0 = arith.constant 0 : index
    %0 = vector.load %arg2[%c0, %c0_0] : memref<8x256xi8, #tpu.memory_space<vmem>>, vector<8x256xi8>
    %1 = arith.uitofp %0 : vector<8x256xi8> to vector<8x256xf32>
    %c0_1 = arith.constant 0 : index
    %c0_2 = arith.constant 0 : index
    %2 = vector.load %arg3[%c0_1, %c0_2] : memref<8x256xf32, #tpu.memory_space<vmem>>, vector<8x256xf32>
    tpu.vector_store %arg3[%c0_1, %c0_2], %1 {strides = array<i32>} : memref<8x256xf32, #tpu.memory_space<vmem>>, vector<8x256xf32>,
    return
  }
  func.func @transform_0(%arg0: i32, %arg1: i32) -> (i32, i32) {
    %c0_i32 = arith.constant 0 : i32
    return %arg0, %arg1 : i32, i32
  }
  func.func @transform_1(%arg0: i32, %arg1: i32) -> (i32, i32) {
    %c0_i32 = arith.constant 0 : i32
    return %arg0, %arg1 : i32, i32
  }
}

</mosaic_0001>

<llo_original>
// kernel: base_features_extractor_forward.1
$region0: #{base_features_extractor_forward.1}
  #allocation0 [shape = 'u32[]', space=smem, size = 0x4, offset = 0x4, fixed_abs, tag = 'smem constant byte address 0x4 - core index']
  #allocation1 [shape = 'u32[144,128]{1,0:T(1,128)}', space=vmem, size = 0x12000, scoped, tag = 'internal scratch']
  %s0 = inlined_call_operand.vmem [shape: u8[8,256], index: 0, kind: input, shape index: {}]
  %s1 = inlined_call_operand.vmem [shape: f32[8,256], index: 1, kind: output, shape index: {}]
  %s2 = sld [smem:[#allocation0]]
  $region14: #{base_features_extractor_forward.1} parent=0
    _
  %s4 = ssub.s32 1, %s2
  %s5 = scalar_select 0, %s4, %s2
  // Predicated region
  $region2: #{base_features_extractor_forward.1} parent=0 // pred_check
    _
  $region3: #{base_features_extractor_forward.1} parent=0 // pred_check_branch
    %7 = sbr.rel (0) target = $region5
  $region4: #{base_features_extractor_forward.1} parent=0 // pred_region
    _
  $region5: #{base_features_extractor_forward.1} parent=0 // pred_fallthru
    _
  %v8 = vld [vmem:[%s0] sm:$0xf]
  %v9 = vunpack.c.0.s8 %v8
  %v10 = vunpack.c.1.s8 %v8
  %v11 = vand.u32 %v9, 255
  %v12 = vand.u32 %v10, 255
  %v13 = vcvt.s32.f32 %v11
  %v14 = vcvt.s32.f32 %v12
  %15 = vst [vmem:[%s1] sm:$0xff] %v13
  %16 = vst [vmem:[%s1 + $0x8] sm:$0xff] %v14
  // Predicated region
  $region6: #{base_features_extractor_forward.1} parent=0 // pred_check
    _
  $region7: #{base_features_extractor_forward.1} parent=0 // pred_check_branch
    %18 = sbr.rel (0) target = $region9
  $region8: #{base_features_extractor_forward.1} parent=0 // pred_region
    _
  $region9: #{base_features_extractor_forward.1} parent=0 // pred_fallthru
    _
  // Predicated region
  $region10: #{base_features_extractor_forward.1} parent=0 // pred_check
    _
  $region11: #{base_features_extractor_forward.1} parent=0 // pred_check_branch
    %20 = sbr.rel (0) target = $region13
  $region12: #{base_features_extractor_forward.1} parent=0 // pred_region
    _
  $region13: #{base_features_extractor_forward.1} parent=0 // pred_fallthru
    _

</llo_original>
